<compile_context>
chip_gen: v5e
topology: v5e:2x2
jax: 0.10.0
libtpu: 0.0.40
codegen_flags: <defaults>
</compile_context>

<pallas_src>
import jax
import jax.numpy as jnp
from jax import lax
from jax.experimental import pallas as pl
from jax.experimental.pallas import tpu as pltpu

EPS = 1e-5          # PyTorch BatchNorm1d default
NEG_SLOPE = 0.01    # PyTorch LeakyReLU default


def _round_up(x, m):
    return (x + m - 1) // m * m


def _pick_tile_l(L, bytes_per_col, budget_bytes):
    """Pick an L tile (multiple of 128 unless L < 128) and the padded L."""
    if L <= 128:
        return L, L
    l_p = _round_up(L, 128)
    tile = 128
    for cand in (2048, 1024, 512, 256):
        if l_p % cand == 0:
            tile = cand
            break
    # Shrink (power-of-two multiples of 128, divisibility preserved) until the
    # double-buffered I/O tiles fit the VMEM budget.
    while tile > 128 and tile * bytes_per_col > budget_bytes:
        tile //= 2
    return tile, l_p


def _stats_kernel(x_ref, g_ref, s_ref):
    # x_ref: (1, Cin, tile_l) input block in native layout.
    # g_ref: (1, Cin, Cin)  per-batch-element Gram accumulator (revisited across tiles).
    # s_ref: (1, Cin, 1)    per-batch-element row-sum accumulator.
    t = pl.program_id(1)

    @pl.when(t == 0)
    def _():
        g_ref[...] = jnp.zeros_like(g_ref)
        s_ref[...] = jnp.zeros_like(s_ref)

    x = x_ref[0]                                             # (Cin, tile_l)
    # Gram on the MXU: contract the L axis of x with itself (x @ x^T), f32 acc.
    g_ref[0] += lax.dot_general(x, x, (((1,), (1,)), ((), ())),
                                preferred_element_type=jnp.float32)
    s_ref[0] += jnp.sum(x.astype(jnp.float32), axis=-1, keepdims=True)


def _apply_kernel(x_ref, w_ref, scale_ref, shift_ref, o_ref):
    # Pointwise conv as one MXU matmul + fused BN affine + LeakyReLU.
    y = jnp.dot(w_ref[...], x_ref[0],
                preferred_element_type=jnp.float32)          # (Cout, tile_l) f32
    z = y * scale_ref[...] + shift_ref[...]
    o_ref[0] = jnp.maximum(z, NEG_SLOPE * z).astype(o_ref.dtype)


def shared_mlp(x, w, b, gamma, beta):
    """SharedMLP forward (train-mode BN).

    x: (N, Cin, L); w: (Cout, Cin) conv1d weight (k=1); b/gamma/beta: (Cout,).
    `b` (conv bias) is accepted but unused: train-mode BN mean subtraction
    cancels any per-channel constant exactly.
    """
    del b  # mathematically cancelled by BN mean subtraction
    N, Cin, L = x.shape
    Cout = w.shape[0]
    NL = N * L

    xb = jnp.dtype(x.dtype).itemsize
    w_c = w.astype(x.dtype)                                  # keep bf16 if x is bf16
    wb = jnp.dtype(w_c.dtype).itemsize

    # ---- tile selection + explicit VMEM budget (conservative for v7x 64 MiB).
    weight_bytes = 2 * Cout * Cin * wb
    per_col = 2 * Cin * xb + 2 * Cout * xb + 4 * Cout * 4    # x, out tiles + f32 temps
    budget = max((40 << 20) - weight_bytes, 1 << 20)
    tile_l, l_p = _pick_tile_l(L, per_col, budget)
    num_tiles = l_p // tile_l

    # Zero-pad L only if needed (zero columns contribute nothing to the stats
    # and padded output columns are sliced off).
    x_p = x if l_p == L else jnp.pad(x, ((0, 0), (0, 0), (0, l_p - L)))

    def _vmem_limit(need):
        return int(min(56 << 20, max(32 << 20, need + (4 << 20))))

    stats_need = (2 * Cin * tile_l * xb + 2 * Cin * Cin * 4 + 2 * Cin * 4
                  + Cin * tile_l * 4)
    apply_need = (2 * Cin * tile_l * xb + 2 * Cout * tile_l * xb + weight_bytes
                  + 4 * Cout * 4 + 2 * Cout * tile_l * 4)

    # ---- pass 1: x-side statistics (Gram + row sums), accumulated per batch row.
    g_part, s_part = pl.pallas_call(
        _stats_kernel,
        out_shape=(jax.ShapeDtypeStruct((N, Cin, Cin), jnp.float32),
                   jax.ShapeDtypeStruct((N, Cin, 1), jnp.float32)),
        grid=(N, num_tiles),
        in_specs=[pl.BlockSpec((1, Cin, tile_l), lambda n, t: (n, 0, t))],
        out_specs=(pl.BlockSpec((1, Cin, Cin), lambda n, t: (n, 0, 0)),
                   pl.BlockSpec((1, Cin, 1), lambda n, t: (n, 0, 0))),
        compiler_params=pltpu.CompilerParams(
            dimension_semantics=("parallel", "arbitrary"),
            vmem_limit_bytes=_vmem_limit(stats_need)),
    )(x_p)

    # ---- tiny XLA: fold batch stats + BN affine into per-channel scale/shift.
    n_valid = jnp.float32(NL)
    g = jnp.sum(g_part, axis=0)                              # (Cin, Cin)
    s = jnp.sum(s_part, axis=0)                              # (Cin, 1)
    mean_x = s / n_valid
    cov_x = g / n_valid - mean_x @ mean_x.T                  # biased covariance of x
    w32 = w.astype(jnp.float32)
    mean_y = w32 @ mean_x                                    # (Cout, 1); conv bias cancels
    var_y = jnp.sum((w32 @ cov_x) * w32, axis=1, keepdims=True)
    inv_std = lax.rsqrt(var_y + EPS)
    scale = gamma.astype(jnp.float32).reshape(Cout, 1) * inv_std
    shift = beta.astype(jnp.float32).reshape(Cout, 1) - mean_y * scale

    # ---- pass 2: matmul + fused affine + LeakyReLU, native output layout.
    out = pl.pallas_call(
        _apply_kernel,
        out_shape=jax.ShapeDtypeStruct((N, Cout, l_p), x.dtype),
        grid=(N, num_tiles),
        in_specs=[
            pl.BlockSpec((1, Cin, tile_l), lambda n, t: (n, 0, t)),
            pl.BlockSpec((Cout, Cin), lambda n, t: (0, 0)),
            pl.BlockSpec((Cout, 1), lambda n, t: (0, 0)),
            pl.BlockSpec((Cout, 1), lambda n, t: (0, 0)),
        ],
        out_specs=pl.BlockSpec((1, Cout, tile_l), lambda n, t: (n, 0, t)),
        compiler_params=pltpu.CompilerParams(
            dimension_semantics=("parallel", "parallel"),
            vmem_limit_bytes=_vmem_limit(apply_need)),
    )(x_p, w_c, scale, shift)

    return out if l_p == L else out[:, :, :L]


def shared_mlp_ref(x, w, b, gamma, beta):
    """Pure-JAX reference mirroring PyTorch train-mode forward (bias included)."""
    y = jnp.einsum("oi,nil->nol", w, x,
                   precision=jax.lax.Precision.HIGHEST) + b[None, :, None]
    mean = jnp.mean(y, axis=(0, 2), keepdims=True)
    var = jnp.mean((y - mean) ** 2, axis=(0, 2), keepdims=True)
    y_hat = (y - mean) * jax.lax.rsqrt(var + EPS)
    y_bn = y_hat * gamma[None, :, None] + beta[None, :, None]
    return jnp.where(y_bn >= 0, y_bn, NEG_SLOPE * y_bn)


if __name__ == "__main__":
    # Small shapes consistent with SharedMLP(in_dim=4, out_dim=8) on (N=2, Cin=4, L=16).
    N, Cin, Cout, L = 2, 4, 8, 16
    key = jax.random.PRNGKey(0)
    kx, kw, kb, kg, kbe = jax.random.split(key, 5)

    x = jax.random.normal(kx, (N, Cin, L), dtype=jnp.float32)
    w = jax.random.normal(kw, (Cout, Cin), dtype=jnp.float32) * 0.5
    b = jax.random.normal(kb, (Cout,), dtype=jnp.float32) * 0.1
    gamma = 1.0 + 0.1 * jax.random.normal(kg, (Cout,), dtype=jnp.float32)
    beta = 0.1 * jax.random.normal(kbe, (Cout,), dtype=jnp.float32)

    out = jax.block_until_ready(shared_mlp(x, w, b, gamma, beta))

    ref = shared_mlp_ref(x, w, b, gamma, beta)
    assert out.shape == (N, Cout, L)
    assert jnp.allclose(out, ref, atol=1e-4, rtol=1e-4), "mismatch vs reference"

    print("KERNEL_OK")
</pallas_src>

<mosaic_0001>
module attributes {stable_mosaic.version = 11 : i64} {
  func.func @_stats_kernel(%arg0: i32, %arg1: i32, %arg2: memref<1x4x16xf32, #tpu.memory_space<vmem>>, %arg3: memref<1x4x4xf32, #tpu.memory_space<vmem>>, %arg4: memref<1x4x1xf32, #tpu.memory_space<vmem>>) attributes {dimension_semantics = [#tpu.dimension_semantics<parallel>, #tpu.dimension_semantics<arbitrary>], iteration_bounds = array<i64: 2, 1>, scalar_prefetch = 0 : i64, scratch_operands = 0 : i64, tpu.core_type = #tpu.core_type<tc>, window_params = [{transform_indices = @transform_0, window_bounds = array<i64: 1, 4, 16>}, {transform_indices = @transform_1, window_bounds = array<i64: 1, 4, 4>}, {transform_indices = @transform_2, window_bounds = array<i64: 1, 4, 1>}]} {
    %c0_i32 = arith.constant 0 : i32
    %0 = arith.cmpi eq, %arg1, %c0_i32 : i32
    %1 = arith.extui %0 : i1 to i32
    %c0_i32_0 = arith.constant 0 : i32
    %2 = arith.cmpi ne, %1, %c0_i32_0 : i32
    scf.if %2 {
      %cst_16 = arith.constant 0.000000e+00 : f32
      %20 = vector.broadcast %cst_16 : f32 to vector<1x4x4xf32>
      %c0_17 = arith.constant 0 : index
      %c0_18 = arith.constant 0 : index
      %c0_19 = arith.constant 0 : index
      %21 = vector.load %arg3[%c0_17, %c0_18, %c0_19] : memref<1x4x4xf32, #tpu.memory_space<vmem>>, vector<1x4x4xf32>
      tpu.vector_store %arg3[%c0_17, %c0_18, %c0_19], %20 {strides = array<i32>} : memref<1x4x4xf32, #tpu.memory_space<vmem>>, vector<1x4x4xf32>,
      %cst_20 = arith.constant 0.000000e+00 : f32
      %22 = vector.broadcast %cst_20 : f32 to vector<1x4x1xf32>
      %c0_21 = arith.constant 0 : index
      %c0_22 = arith.constant 0 : index
      %c0_23 = arith.constant 0 : index
      %23 = vector.load %arg4[%c0_21, %c0_22, %c0_23] : memref<1x4x1xf32, #tpu.memory_space<vmem>>, vector<1x4x1xf32>
      tpu.vector_store %arg4[%c0_21, %c0_22, %c0_23], %22 {strides = array<i32>} : memref<1x4x1xf32, #tpu.memory_space<vmem>>, vector<1x4x1xf32>,
    } else {
    }
    %c0 = arith.constant 0 : index
    %c0_1 = arith.constant 0 : index
    %c0_2 = arith.constant 0 : index
    %3 = vector.load %arg2[%c0, %c0_1, %c0_2] : memref<1x4x16xf32, #tpu.memory_space<vmem>>, vector<1x4x16xf32>
    %4 = vector.shape_cast %3 : vector<1x4x16xf32> to vector<4x16xf32>
    %c0_3 = arith.constant 0 : index
    %c0_4 = arith.constant 0 : index
    %c0_5 = arith.constant 0 : index
    %5 = vector.load %arg3[%c0_3, %c0_4, %c0_5] : memref<1x4x4xf32, #tpu.memory_space<vmem>>, vector<1x4x4xf32>
    %6 = vector.shape_cast %5 : vector<1x4x4xf32> to vector<4x4xf32>
    %cst = arith.constant dense<0.000000e+00> : vector<4x4xf32>
    %7 = tpu.matmul %4, %4, %cst {dimension_numbers = #tpu.dot_dimension_numbers<[1], [1], [0], [0], [0, 0, 1, 0], [], []>} : vector<4x16xf32>, vector<4x16xf32>, vector<4x4xf32> -> vector<4x4xf32>
    %8 = arith.addf %6, %7 : vector<4x4xf32>
    %c0_6 = arith.constant 0 : index
    %c0_7 = arith.constant 0 : index
    %c0_8 = arith.constant 0 : index
    %9 = vector.load %arg3[%c0_6, %c0_7, %c0_8] : memref<1x4x4xf32, #tpu.memory_space<vmem>>, vector<1x4x4xf32>
    %10 = vector.shape_cast %9 : vector<1x4x4xf32> to vector<4x4xf32>
    %11 = vector.shape_cast %8 : vector<4x4xf32> to vector<1x4x4xf32>
    tpu.vector_store %arg3[%c0_6, %c0_7, %c0_8], %11 {strides = array<i32>} : memref<1x4x4xf32, #tpu.memory_space<vmem>>, vector<1x4x4xf32>,
    %c0_9 = arith.constant 0 : index
    %c0_10 = arith.constant 0 : index
    %c0_11 = arith.constant 0 : index
    %12 = vector.load %arg4[%c0_9, %c0_10, %c0_11] : memref<1x4x1xf32, #tpu.memory_space<vmem>>, vector<1x4x1xf32>
    %13 = vector.shape_cast %12 : vector<1x4x1xf32> to vector<4x1xf32>
    %cst_12 = arith.constant dense<0.000000e+00> : vector<4xf32>
    %14 = vector.multi_reduction <add>, %4, %cst_12 [1] : vector<4x16xf32> to vector<4xf32>
    %15 = vector.shape_cast %14 : vector<4xf32> to vector<4x1xf32>
    %16 = arith.addf %13, %15 : vector<4x1xf32>
    %c0_13 = arith.constant 0 : index
    %c0_14 = arith.constant 0 : index
    %c0_15 = arith.constant 0 : index
    %17 = vector.load %arg4[%c0_13, %c0_14, %c0_15] : memref<1x4x1xf32, #tpu.memory_space<vmem>>, vector<1x4x1xf32>
    %18 = vector.shape_cast %17 : vector<1x4x1xf32> to vector<4x1xf32>
    %19 = vector.shape_cast %16 : vector<4x1xf32> to vector<1x4x1xf32>
    tpu.vector_store %arg4[%c0_13, %c0_14, %c0_15], %19 {strides = array<i32>} : memref<1x4x1xf32, #tpu.memory_space<vmem>>, vector<1x4x1xf32>,
    return
  }
  func.func @transform_0(%arg0: i32, %arg1: i32) -> (i32, i32, i32) {
    %c0_i32 = arith.constant 0 : i32
    %c0_i32_0 = arith.constant 0 : i32
    return %arg0, %c0_i32, %arg1 : i32, i32, i32
  }
  func.func @transform_1(%arg0: i32, %arg1: i32) -> (i32, i32, i32) {
    %c0_i32 = arith.constant 0 : i32
    %c0_i32_0 = arith.constant 0 : i32
    %c0_i32_1 = arith.constant 0 : i32
    return %arg0, %c0_i32, %c0_i32_0 : i32, i32, i32
  }
  func.func @transform_2(%arg0: i32, %arg1: i32) -> (i32, i32, i32) {
    %c0_i32 = arith.constant 0 : i32
    %c0_i32_0 = arith.constant 0 : i32
    %c0_i32_1 = arith.constant 0 : i32
    return %arg0, %c0_i32, %c0_i32_0 : i32, i32, i32
  }
}

</mosaic_0001>

<llo_original>
// kernel: tpu_custom_call.1
$region0: #{tpu_custom_call.1}
  #allocation0 [shape = 'u32[]', space=smem, size = 0x4, offset = 0x4, fixed_abs, tag = 'smem constant byte address 0x4 - core index']
  #allocation1 [shape = 'u32[72,128]{1,0:T(1,128)}', space=vmem, size = 0x9000, scoped, tag = 'internal scratch']
  %s0 = inlined_call_operand.hbm [shape: f32[2,4,16], index: 0, kind: input, shape index: {}]
  %s1 = inlined_call_operand.hbm [shape: f32[2,4,4], index: 1, kind: output, shape index: {0}]
  %s2 = inlined_call_operand.vmem [shape: f32[2,4,1], index: 2, kind: output, shape index: {1}]
  %3 = xla_tuple %s1, %s2
  %s4 = sld [smem:[#allocation0]]
  $region53: #{tpu_custom_call.1} parent=0
    _
  %s6 = ssub.s32 1, %s4
  %s7 = scalar_select 0, %s6, %s4
  $region1: #{tpu_custom_call.1} parent=0
    #allocation2 [shape = 'u8[4096]{0}', space=vmem, size = 0x1000, scoped, tag = 'input window, operand 0']
    #allocation3 [shape = 's32[2]{0}', space=sflag, size = 0x8, scoped, tag = 'scoped memory for tpu_custom_call.1']
    #allocation4 [shape = 's32[2]{0}', space=sflag, size = 0x8, scoped, tag = 'scoped memory for tpu_custom_call.1']
    #allocation5 [shape = 'u8[4096]{0}', space=vmem, size = 0x1000, scoped, tag = 'output window, operand 0']
    %8 = vsyncpa [#allocation3], 0
    %s9 = scalar_lea.sflag [#allocation3], 1
    %10 = vsyncpa %s9, 0
    %11 = vsyncpa [#allocation4], 0
    %s12 = scalar_lea.sflag [#allocation4], 1
    %13 = vsyncpa %s12, 0
    loop: start=0, step=1, limit=4
    $region2: #{tpu_custom_call.1} parent=1 // loop_pre_header
      _
    $region3: #{tpu_custom_call.1} parent=1 // loop_header
      %s15 = sphi 0, %s19
      %p16 = scmp.ge.s32.totalorder %s15, 4
      %s22 = sphi 0, %s34
      %s23 = sphi 0, %s30
      %s24 = sphi 0, %s22
      %s25 = sphi 0, %s23
      %s26 = sphi 0, %s24
      %s27 = sphi 0, %s25
      %s39 = sphi 0, %s41
      %s42 = sphi 0, %s39
      %s43 = sphi 0, %s42
      %s59 = sphi 0, %s43
      %s65 = sphi 0, %s67
      %s68 = sphi 0, %s65
      %s69 = sphi 0, %s68
      %s85 = sphi 0, %s69
      %s91 = sphi 0, %s93
      %s94 = sphi 0, %s91
      %s95 = sphi 0, %s94
      %s111 = sphi 0, %s95
    $region4: #{tpu_custom_call.1} parent=1 // loop_header_branch
      %18 = sbr.rel (%p16) target = $region8
    $region5: #{tpu_custom_call.1} parent=1 // loop_body
      %s20 = ssub.s32 %s15, 1
      %s21 = ssub.s32 %s15, 2
      %s28 = sadd.s32 1, %s23
      %p29 = scmp.ge.s32.totalorder %s28, 1
      %s30 = scalar_select %p29, 0, %s28
      %s31 = sadd.s32 1, %s22
      %s32 = scalar_select %p29, %s31, %s22
      %p33 = scmp.ge.s32.totalorder %s32, 2
      %s34 = scalar_select %p33, 0, %s32
      %s35 = ssub.s32 %s22, %s34
      %s36 = ssub.s32 %s23, %s30
      %s37 = sor.u32 %s35, %s36
      %p38 = scmp.eq.s32.totalorder %s37, 0
      %s40 = sadd.s32 %s39, 1
      %s41 = scalar_select %p38, %s39, %s40
      %p44 = pneg %p38
      %p45 = scmp.eq.s32.totalorder %s15, 1
      %p46 = por %p44, %p45
      %p47 = scmp.ne.s32.totalorder %s39, %s42
      %p48 = scmp.eq.s32.totalorder %s15, 0
      %p49 = por %p47, %p48
      %p50 = scmp.ne.s32.totalorder %s39, %s42
      %p51 = scmp.eq.s32.totalorder %s20, 1
      %p52 = por %p50, %p51
      %p53 = scmp.ne.s32.totalorder %s42, %s43
      %p54 = scmp.eq.s32.totalorder %s20, 0
      %p55 = por %p53, %p54
      %p56 = scmp.ne.s32.totalorder %s42, %s43
      %p57 = scmp.eq.s32.totalorder %s21, 1
      %p58 = por %p56, %p57
      %p60 = scmp.ne.s32.totalorder %s43, %s59
      %p61 = scmp.eq.s32.totalorder %s21, 0
      %p62 = por %p60, %p61
      %s63 = ssub.s32 %s22, %s34
      %p64 = scmp.eq.s32.totalorder %s63, 0
      %s66 = sadd.s32 %s65, 1
      %s67 = scalar_select %p64, %s65, %s66
      %p70 = pneg %p64
      %p71 = scmp.eq.s32.totalorder %s15, 1
      %p72 = por %p70, %p71
      %p73 = scmp.ne.s32.totalorder %s65, %s68
      %p74 = scmp.eq.s32.totalorder %s15, 0
      %p75 = por %p73, %p74
      %p76 = scmp.ne.s32.totalorder %s65, %s68
      %p77 = scmp.eq.s32.totalorder %s20, 1
      %p78 = por %p76, %p77
      %p79 = scmp.ne.s32.totalorder %s68, %s69
      %p80 = scmp.eq.s32.totalorder %s20, 0
      %p81 = por %p79, %p80
      %p82 = scmp.ne.s32.totalorder %s68, %s69
      %p83 = scmp.eq.s32.totalorder %s21, 1
      %p84 = por %p82, %p83
      %p86 = scmp.ne.s32.totalorder %s69, %s85
      %p87 = scmp.eq.s32.totalorder %s21, 0
      %p88 = por %p86, %p87
      %s89 = ssub.s32 %s22, %s34
      %p90 = scmp.eq.s32.totalorder %s89, 0
      %s92 = sadd.s32 %s91, 1
      %s93 = scalar_select %p90, %s91, %s92
      %p96 = pneg %p90
      %p97 = scmp.eq.s32.totalorder %s15, 1
      %p98 = por %p96, %p97
      %p99 = scmp.ne.s32.totalorder %s91, %s94
      %p100 = scmp.eq.s32.totalorder %s15, 0
      %p101 = por %p99, %p100
      %p102 = scmp.ne.s32.totalorder %s91, %s94
      %p103 = scmp.eq.s32.totalorder %s20, 1
      %p104 = por %p102, %p103
      %p105 = scmp.ne.s32.totalorder %s94, %s95
      %p106 = scmp.eq.s32.totalorder %s20, 0
      %p107 = por %p105, %p106
      %p108 = scmp.ne.s32.totalorder %s94, %s95
      %p109 = scmp.eq.s32.totalorder %s21, 1
      %p110 = por %p108, %p109
      %p112 = scmp.ne.s32.totalorder %s95, %s111
      %p113 = scmp.eq.s32.totalorder %s21, 0
      %p114 = por %p112, %p113
      %p115 = scmp.le.s32.totalorder 1, %s15
      %p116 = scmp.lt.s32.totalorder %s15, 3
      %p117 = pnand %p115, %p116
      %p118 = pneg %p117
      // Predicated region
      $region9: #{tpu_custom_call.1} parent=5 // pred_check
        _
      $region10: #{tpu_custom_call.1} parent=5 // pred_check_branch
        %120 = sbr.rel (%p117) target = $region12
      $region11: #{tpu_custom_call.1} parent=5 // pred_region
        %s121 = ssub.s32 %s15, 1
      $region12: #{tpu_custom_call.1} parent=5 // pred_fallthru
        _
      %p122 = scmp.lt.s32.totalorder %s15, 2
      // Predicated region
      $region13: #{tpu_custom_call.1} parent=5 // pred_check
        %p123 = pneg %p122
      $region14: #{tpu_custom_call.1} parent=5 // pred_check_branch
        %125 = sbr.rel (%p123) target = $region16
      $region15: #{tpu_custom_call.1} parent=5 // pred_region
        // Predicated region
        $region17: #{tpu_custom_call.1} parent=15 // pred_check
          %p126 = pneg %p49
        $region18: #{tpu_custom_call.1} parent=15 // pred_check_branch
          %128 = sbr.rel (%p126) target = $region20
        $region19: #{tpu_custom_call.1} parent=15 // pred_region
          %s129 = sand.u32 %s39, 1
          %s130 = scalar_lea.sflag [#allocation3], %s129
          %s131 = sand.u32 %s39, 1
          %s132 = smul.addr %s131, 4
          %s133 = scalar_lea.vmem [#allocation2], %s132
          %135 = vsyncadd %s130, 0
          %s136 = sadd.s32 %s23, %s22
          %s137 = smul.addr %s136, 4
          %s138 = scalar_lea.hbm %s0, %s137
          %s140 = sshll.u32 %s138, 4
          %s141 = int_to_ptr.hbm [resolvable:$true] %s140
          %s142 = sshll.u32 %s133, 4
          %s143 = int_to_ptr.vmem [resolvable:$true] %s142
          %145 = dma.hbm_to_vmem [thread:$0]  %s141, 64, %s143, %s130
        $region20: #{tpu_custom_call.1} parent=15 // pred_fallthru
          _
      $region16: #{tpu_custom_call.1} parent=5 // pred_fallthru
        _
      %p146 = scmp.le.s32.totalorder 1, %s15
      %p147 = scmp.lt.s32.totalorder %s15, 3
      %p148 = pnand %p146, %p147
      %p149 = pneg %p148
      // Predicated region
      $region21: #{tpu_custom_call.1} parent=5 // pred_check
        _
      $region22: #{tpu_custom_call.1} parent=5 // pred_check_branch
        %151 = sbr.rel (%p148) target = $region24
      $region23: #{tpu_custom_call.1} parent=5 // pred_region
        %s152 = ssub.s32 %s15, 1
        %s153 = sand.u32 %s42, 1
        %s154 = scalar_lea.sflag [#allocation3], %s153
        %s155 = sand.u32 %s42, 1
        %s156 = smul.addr %s155, 4
        %s157 = scalar_lea.vmem [#allocation2], %s156
        // Predicated region
        $region25: #{tpu_custom_call.1} parent=23 // pred_check
          %p158 = pneg %p55
        $region26: #{tpu_custom_call.1} parent=23 // pred_check_branch
          %160 = sbr.rel (%p158) target = $region28
        $region27: #{tpu_custom_call.1} parent=23 // pred_region
          %162 = dma.done %s154, 64
        $region28: #{tpu_custom_call.1} parent=23 // pred_fallthru
          _
        %s163 = sand.u32 %s42, 1
        %s164 = scalar_lea.sflag [#allocation3], %s163
        %s165 = sand.u32 %s42, 1
        %s166 = smul.addr %s165, 4
        %s167 = scalar_lea.vmem [#allocation2], %s166
        %p168 = pneg %p55
        %p169 = pneg %p52
        %p170 = pneg %p81
        %p171 = pneg %p78
        %s172 = sand.u32 %s68, 1
        %s173 = scalar_lea.sflag [#allocation4], %s172
        %s174 = sand.u32 %s68, 1
        %s175 = smul.addr %s174, 4
        %s176 = scalar_lea.vmem [#allocation5], %s175
        %p177 = pneg %p107
        %p178 = pneg %p104
        %p179 = scmp.lt.s32.totalorder %s24, 1
        %s180 = scalar_select %p179, %s24, 1
        %s181 = smul.addr %s180, 4
        %s182 = scalar_lea.vmem %s2, %s181
        %p183 = scmp.lt.s32.totalorder %s24, 1
        %s184 = scalar_select %p183, %s24, 1
        %s185 = smul.addr %s184, 4
        %s186 = scalar_lea.vmem %s2, %s185
        %p187 = scmp.eq.s32.totalorder %s25, 0
        // Predicated region
        $region29: #{tpu_custom_call.1} parent=23 // pred_check
          %p188 = pneg %p187
        $region30: #{tpu_custom_call.1} parent=23 // pred_check_branch
          %190 = sbr.rel (%p188) target = $region32
        $region31: #{tpu_custom_call.1} parent=23 // pred_region
          %vm191 = vcmask 27648
          %192 = vst.msk [vmem:[%s176] sm:$0xf] %vm191, 0.0
          %vm193 = vcmask 3072
          %194 = vst.msk [vmem:[%s186] sm:$0xf] %vm193, 0.0
        $region32: #{tpu_custom_call.1} parent=23 // pred_fallthru
          _
        %v195 = vld [vmem:[%s157] sm:$0xf]
        %v196 = vld [vmem:[%s176] sm:$0xf]
        %vm197 = vcmask 130048
        %v199 = vsel %vm197, %v195, 0
        %201 = vmatpush.xpose.msra.mxu0 0.0
        %202 = vmatpush.xpose.msra.mxu0 0.0
        %203 = vmatpush.xpose.msra.mxu0 0.0
        %204 = vmatpush.xpose.msra.mxu0 0.0
        %205 = vmatpush.xpose.msra.mxu0 0.0
        %206 = vmatpush.xpose.msra.mxu0 0.0
        %207 = vmatpush.xpose.msra.mxu0 0.0
        %208 = vmatpush.xpose.msra.mxu0 0.0
        %209 = vmatpush.xpose.msra.mxu0 0.0
        %210 = vmatpush.xpose.msra.mxu0 0.0
        %211 = vmatpush.xpose.msra.mxu0 0.0
        %212 = vmatpush.xpose.msra.mxu0 0.0
        %213 = vmatpush.xpose.msra.mxu0 0.0
        %214 = vmatpush.xpose.msra.mxu0 0.0
        %215 = vmatpush.xpose.msra.mxu0 0.0
        %216 = vmatpush.xpose.msra.mxu0 %v199
        %217 = vmatmul.f32.gmra.mxu0 %v199
        %v218 = vpop.f32.mrf.mxu0
        %v219 = vadd.f32 0.0, %v218
        %220 = vdwg.mxu0
        %v221 = vadd.f32 %v196, %v219
        %vm222 = vcmask 27648
        %223 = vst.msk [vmem:[%s176] sm:$0xf] %vm222, %v221
        %v224 = vld [vmem:[%s186] sm:$0xf]
        %vm225 = vcmask 125952
        %v226 = vsel %vm225, %v195, 0.0
        %227 = vadd.xlane.f32.xlu0 %v226
        %v228 = vpop.xlane.xlu0 %227
        %v229 = vadd.f32 %v224, %v228
        %vm230 = vcmask 3072
        %231 = vst.msk [vmem:[%s186] sm:$0xf] %vm230, %v229
        %s232 = sand.u32 %s68, 1
        %s233 = scalar_lea.sflag [#allocation4], %s232
        %s234 = sand.u32 %s68, 1
        %s235 = smul.addr %s234, 4
        %s236 = scalar_lea.vmem [#allocation5], %s235
        %p237 = scmp.lt.s32.totalorder %s24, 1
        %s238 = scalar_select %p237, %s24, 1
        %s239 = smul.addr %s238, 4
        %s240 = scalar_lea.vmem %s2, %s239
        // Predicated region
        $region33: #{tpu_custom_call.1} parent=23 // pred_check
          %p241 = pneg %p78
        $region34: #{tpu_custom_call.1} parent=23 // pred_check_branch
          %243 = sbr.rel (%p241) target = $region36
        $region35: #{tpu_custom_call.1} parent=23 // pred_region
          %245 = vsyncadd %s233, 0
          %s246 = smul.addr %s24, 4
          %s247 = scalar_lea.hbm %s1, %s246
          %s249 = sshll.u32 %s236, 4
          %s250 = int_to_ptr.vmem [resolvable:$true] %s249
          %s251 = sshll.u32 %s247, 4
          %s252 = int_to_ptr.hbm [resolvable:$true] %s251
          %254 = dma.vmem_to_hbm [thread:$0]  %s250, 64, %s252, %s233
        $region36: #{tpu_custom_call.1} parent=23 // pred_fallthru
          _
        // Predicated region
        $region37: #{tpu_custom_call.1} parent=23 // pred_check
          %p255 = pneg %p104
        $region38: #{tpu_custom_call.1} parent=23 // pred_check_branch
          %257 = sbr.rel (%p255) target = $region40
        $region39: #{tpu_custom_call.1} parent=23 // pred_region
          _
        $region40: #{tpu_custom_call.1} parent=23 // pred_fallthru
          _
      $region24: #{tpu_custom_call.1} parent=5 // pred_fallthru
        _
      %p258 = scmp.le.s32.totalorder 2, %s15
      // Predicated region
      $region41: #{tpu_custom_call.1} parent=5 // pred_check
        %p259 = pneg %p258
      $region42: #{tpu_custom_call.1} parent=5 // pred_check_branch
        %261 = sbr.rel (%p259) target = $region44
      $region43: #{tpu_custom_call.1} parent=5 // pred_region
        %s262 = ssub.s32 %s15, 2
        // Predicated region
        $region45: #{tpu_custom_call.1} parent=43 // pred_check
          %p263 = pneg %p84
        $region46: #{tpu_custom_call.1} parent=43 // pred_check_branch
          %265 = sbr.rel (%p263) target = $region48
        $region47: #{tpu_custom_call.1} parent=43 // pred_region
          %s266 = sand.u32 %s69, 1
          %s267 = scalar_lea.sflag [#allocation4], %s266
          %s268 = sand.u32 %s69, 1
          %s269 = smul.addr %s268, 4
          %s270 = scalar_lea.vmem [#allocation5], %s269
          %272 = dma.done %s267, 64
        $region48: #{tpu_custom_call.1} parent=43 // pred_fallthru
          _
        // Predicated region
        $region49: #{tpu_custom_call.1} parent=43 // pred_check
          %p273 = pneg %p110
        $region50: #{tpu_custom_call.1} parent=43 // pred_check_branch
          %275 = sbr.rel (%p273) target = $region52
        $region51: #{tpu_custom_call.1} parent=43 // pred_region
          %p276 = scmp.lt.s32.totalorder %s26, 1
          %s277 = scalar_select %p276, %s26, 1
          %s278 = smul.addr %s277, 4
          %s279 = scalar_lea.vmem %s2, %s278
        $region52: #{tpu_custom_call.1} parent=43 // pred_fallthru
          _
      $region44: #{tpu_custom_call.1} parent=5 // pred_fallthru
        _
    $region6: #{tpu_custom_call.1} parent=1 // loop_footer
      %s19 = sadd.s32 1, %s15
    $region7: #{tpu_custom_call.1} parent=1 // loop_footer_branch
      %14 = sbr.rel target = $region3
    $region8: #{tpu_custom_call.1} parent=1 // loop_exit
      _
    %280 = vsyncpa [#allocation3], 1
    %s281 = scalar_lea.sflag [#allocation3], 1
    %282 = vsyncpa %s281, 1
    %283 = vsyncpa [#allocation4], 1
    %s284 = scalar_lea.sflag [#allocation4], 1
    %285 = vsyncpa %s284, 1

</llo_original>
